<compile_context>
chip_gen: v7x
topology: tpu7x:2x2x1
jax: 0.10.0
libtpu: 0.0.40
codegen_flags: <defaults>
</compile_context>

<pallas_src>
import math

import jax
import jax.numpy as jnp
from jax.experimental import pallas as pl
from jax.experimental.pallas import tpu as pltpu


_LANE = 128
# Candidate lane-dense widths for the 2-D view (all multiples of 128).
_WIDTH_CANDIDATES = (8192, 4096, 2048, 1024, 512, 256, 128)


def _swish_kernel(b_ref, x_ref, o_ref):
    # omega = (1 + exp(B*x))**(-1) == 0.5 - 0.5*tanh(0.5*B*x)
    # (same module semantics, single EUP transcendental, no inf intermediate).
    x = x_ref[...]
    xf = x.astype(jnp.float32)
    b = b_ref[0]                                   # B scalar from SMEM
    omega = 0.5 - 0.5 * jnp.tanh(xf * (0.5 * b))
    o_ref[...] = (xf * omega).astype(o_ref.dtype)


def _swish_jnp(x, b):
    # Plain-JAX path for the tiny unaligned tail (and scalar inputs).
    xf = x.astype(jnp.float32)
    return (xf * (0.5 - 0.5 * jnp.tanh(0.5 * b * xf))).astype(x.dtype)


def _pick_width(n):
    """Widest lane-dense last dim dividing n; prefer leaving >= 8 rows."""
    for w in _WIDTH_CANDIDATES:
        if n % w == 0 and n // w >= 8:
            return w
    for w in _WIDTH_CANDIDATES:
        if n % w == 0:
            return w
    return _LANE  # unreachable: n is always a multiple of 128 here


def _default_block_bytes():
    """Per-generation target block size (HBM-streaming elementwise kernel)."""
    try:
        kind = jax.devices()[0].device_kind.lower()
    except Exception:
        return 4 << 20
    if "v5" in kind:
        return 3 << 20     # v5e: 16 MiB default scoped VMEM; 3 MiB already amortizes step cost
    if "v7" in kind:
        return 8 << 20     # v7x: 3.2 TB/s makes the ~0.35us step a big tax; 64 MiB VMEM bounds us
    if "v6" in kind:
        return 6 << 20
    return 4 << 20


def _swish_flat(flat, B, target_block_bytes, donate_x, enable_input_fusion):
    """Kernel on a flat array whose length is a multiple of 128."""
    n = flat.shape[0]
    dtype = flat.dtype
    itemsize = jnp.dtype(dtype).itemsize

    width = _pick_width(n)
    rows = n // width
    x2d = flat.reshape(rows, width)

    if target_block_bytes is None:
        target_block_bytes = _default_block_bytes()

    # Native sublane packing: rows per packed vreg (8 f32, 16 bf16, 32 int8).
    pack = max(8, 32 // itemsize)

    rows_per_block = max(1, target_block_bytes // (width * itemsize))
    total_bytes = n * itemsize
    if rows_per_block >= rows:
        if total_bytes > (1 << 20) and rows >= 2 * pack:
            # Keep >= 2 row blocks so both v7x TensorCores stream;
            # costs only one extra ~0.35us grid step on single-TC chips.
            half = -(-rows // 2)
            row_block = -(-half // pack) * pack
        else:
            row_block = rows
    else:
        row_block = max(pack, (rows_per_block // pack) * pack)
    row_block = min(row_block, rows)
    grid = (pl.cdiv(rows, row_block),)

    # in + out, double buffered, plus headroom for compiler-internal scratch.
    block_bytes = row_block * width * itemsize
    vmem_limit = int(min(64 << 20, max(16 << 20, 4 * block_bytes + (4 << 20))))

    b_arr = jnp.full((1,), B, dtype=jnp.float32)   # SMEM scalar, no recompile per B

    cost = pl.CostEstimate(
        flops=4 * n,
        transcendentals=n,
        bytes_accessed=2 * n * itemsize,
    )

    allow_fusion = None
    if enable_input_fusion and not donate_x:
        allow_fusion = [False, True]               # fuse x's producer if XLA can

    out2d = pl.pallas_call(
        _swish_kernel,
        out_shape=jax.ShapeDtypeStruct((rows, width), dtype),
        grid_spec=pltpu.PrefetchScalarGridSpec(
            num_scalar_prefetch=0,
            grid=grid,
            in_specs=[
                pl.BlockSpec(memory_space=pltpu.MemorySpace.SMEM),      # B
                pl.BlockSpec((row_block, width), lambda i: (i, 0)),     # x tile
            ],
            out_specs=pl.BlockSpec((row_block, width), lambda i: (i, 0)),
        ),
        compiler_params=pltpu.CompilerParams(
            dimension_semantics=("parallel",),
            vmem_limit_bytes=vmem_limit,
            allow_input_fusion=allow_fusion,
        ),
        cost_estimate=cost,
        input_output_aliases=({1: 0} if donate_x else {}),
    )(b_arr, x2d)

    return out2d.reshape(-1)


def swish(x, B=1.0, *, target_block_bytes=None, donate_x=False,
          enable_input_fusion=True):
    """Applies Swish (as defined in the PyTorch module) elementwise."""
    orig_shape = x.shape
    n = int(math.prod(orig_shape)) if orig_shape else 1
    flat = x.reshape(-1)

    rem = n % _LANE
    if rem:
        # Unaligned path: kernel on the aligned prefix, plain jnp on the
        # <=127-element tail (no full-array pad/slice round trips).
        n_main = n - rem
        tail_out = _swish_jnp(flat[n_main:], float(B))
        if n_main == 0:
            return tail_out.reshape(orig_shape)
        head_out = _swish_flat(flat[:n_main], B, target_block_bytes,
                               donate_x, enable_input_fusion)
        return jnp.concatenate([head_out, tail_out]).reshape(orig_shape)

    out = _swish_flat(flat, B, target_block_bytes, donate_x, enable_input_fusion)
    return out.reshape(orig_shape)


def swish_ref(x, B=1.0):
    bx = x * B
    omega = 1.0 / (1.0 + jnp.exp(bx))
    return x * omega


if __name__ == "__main__":
    B = 1.0

    # NCHW-style input, consistent with typical conv-net usage of this module.
    x = jax.random.normal(jax.random.PRNGKey(0), (2, 4, 16, 16), dtype=jnp.float32)
    out = jax.block_until_ready(swish(x, B=B))
    ref = swish_ref(x, B=B)
    assert out.shape == x.shape and out.dtype == x.dtype
    assert jnp.allclose(out, ref, atol=1e-5, rtol=1e-5)

    # Multi-block path (grid >= 2, row_block rounded to sublane packing).
    x2 = jax.random.normal(jax.random.PRNGKey(1), (16, 8, 32, 32), dtype=jnp.float32)
    out2 = jax.block_until_ready(swish(x2, B=B, target_block_bytes=64 * 1024))
    assert jnp.allclose(out2, swish_ref(x2, B=B), atol=1e-5, rtol=1e-5)

    # Non-multiple-of-128 tail path (kernel on aligned prefix + jnp tail).
    x3 = jax.random.normal(jax.random.PRNGKey(2), (3, 5, 7), dtype=jnp.float32)
    out3 = jax.block_until_ready(swish(x3, B=B))
    assert jnp.allclose(out3, swish_ref(x3, B=B), atol=1e-5, rtol=1e-5)

    # bf16 path (exercises 16-rows-per-vreg sublane packing).
    x4 = jax.random.normal(jax.random.PRNGKey(3), (4, 8, 16, 16), dtype=jnp.bfloat16)
    out4 = jax.block_until_ready(swish(x4, B=B))
    assert out4.dtype == jnp.bfloat16
    assert jnp.allclose(out4.astype(jnp.float32),
                        swish_ref(x4.astype(jnp.float32), B=B),
                        atol=2e-2, rtol=2e-2)

    print("KERNEL_OK")
</pallas_src>

<mosaic_0001>
module attributes {stable_mosaic.version = 11 : i64} {
  func.func @_swish_kernel(%arg0: i32, %arg1: memref<1xf32, #tpu.memory_space<smem>>, %arg2: memref<8x256xf32, #tpu.memory_space<vmem>>, %arg3: memref<8x256xf32, #tpu.memory_space<vmem>>) attributes {dimension_semantics = [#tpu.dimension_semantics<parallel>], iteration_bounds = array<i64: 1>, scalar_prefetch = 0 : i64, scratch_operands = 0 : i64, tpu.core_type = #tpu.core_type<tc>, window_params = [{transform_indices = @transform_0, window_bounds = array<i64: 1>}, {transform_indices = @transform_1, window_bounds = array<i64: 8, 256>}, {transform_indices = @transform_2, window_bounds = array<i64: 8, 256>}]} {
    %c0 = arith.constant 0 : index
    %c0_0 = arith.constant 0 : index
    %0 = vector.load %arg2[%c0, %c0_0] : memref<8x256xf32, #tpu.memory_space<vmem>>, vector<8x256xf32>
    %c0_1 = arith.constant 0 : index
    %1 = memref.load %arg1[%c0_1] : memref<1xf32, #tpu.memory_space<smem>>
    %cst = arith.constant 5.000000e-01 : f32
    %2 = arith.mulf %cst, %1 : f32
    %3 = vector.broadcast %2 : f32 to vector<8x256xf32>
    %4 = arith.mulf %0, %3 : vector<8x256xf32>
    %5 = math.tanh %4 : vector<8x256xf32>
    %cst_2 = arith.constant 5.000000e-01 : f32
    %6 = vector.broadcast %cst_2 : f32 to vector<8x256xf32>
    %7 = arith.mulf %6, %5 : vector<8x256xf32>
    %cst_3 = arith.constant 5.000000e-01 : f32
    %8 = vector.broadcast %cst_3 : f32 to vector<8x256xf32>
    %9 = arith.subf %8, %7 : vector<8x256xf32>
    %10 = arith.mulf %0, %9 : vector<8x256xf32>
    %c0_4 = arith.constant 0 : index
    %c0_5 = arith.constant 0 : index
    %11 = vector.load %arg3[%c0_4, %c0_5] : memref<8x256xf32, #tpu.memory_space<vmem>>, vector<8x256xf32>
    tpu.vector_store %arg3[%c0_4, %c0_5], %10 {strides = array<i32>} : memref<8x256xf32, #tpu.memory_space<vmem>>, vector<8x256xf32>,
    return
  }
  func.func @transform_0(%arg0: i32) -> i32 {
    %c0_i32 = arith.constant 0 : i32
    %c0_i32_0 = arith.constant 0 : i32
    return %c0_i32 : i32
  }
  func.func @transform_1(%arg0: i32) -> (i32, i32) {
    %c0_i32 = arith.constant 0 : i32
    %c0_i32_0 = arith.constant 0 : i32
    return %arg0, %c0_i32 : i32, i32
  }
  func.func @transform_2(%arg0: i32) -> (i32, i32) {
    %c0_i32 = arith.constant 0 : i32
    %c0_i32_0 = arith.constant 0 : i32
    return %arg0, %c0_i32 : i32, i32
  }
}

</mosaic_0001>

<llo_original>
// kernel: tpu_custom_call.1
$region0: #{tpu_custom_call.1}
  #allocation0 [shape = 'u32[]', space=smem, size = 0x4, offset = 0x4, fixed_abs, tag = 'smem constant byte address 0x4 - core index']
  #allocation1 [shape = 'u32[144,128]{1,0:T(1,128)}', space=vmem, size = 0x12000, scoped, tag = 'internal scratch']
  #allocation2 [shape = 'f32[1]{0:T(128)S(6)}', space=smem, size = 0x200, scoped, tag = 'scoped memory for tpu_custom_call.1']
  %s0 = inlined_call_operand.<no memory space> [shape: f32[1], index: 0, kind: input, shape index: {}]
  %s1 = inlined_call_operand.hbm [shape: f32[8,256], index: 1, kind: input, shape index: {}]
  %s2 = inlined_call_operand.hbm [shape: f32[8,256], index: 2, kind: output, shape index: {}]
  %s3 = sld [smem:[#allocation0]]
  $region22: #{tpu_custom_call.1} parent=0
    _
  %s5 = ssub.s32 1, %s3
  %s6 = scalar_select 0, %s5, %s3
  %7 = sst [smem:[#allocation2]] %s0
  $region1: #{tpu_custom_call.1} parent=0
    #allocation3 [shape = 'u8[8192]{0}', space=vmem, size = 0x2000, scoped, tag = 'input window, operand 1, single buffered']
    #allocation4 [shape = 's32[1]{0}', space=sflag, size = 0x4, scoped, tag = 'scoped memory for tpu_custom_call.1']
    #allocation5 [shape = 's32[1]{0}', space=sflag, size = 0x4, scoped, tag = 'scoped memory for tpu_custom_call.1']
    #allocation6 [shape = 'u8[8192]{0}', space=vmem, size = 0x2000, scoped, tag = 'output window, operand 0, single buffered']
    %8 = vsyncpa [#allocation4], 0
    %9 = vsyncpa [#allocation5], 0
    // Predicated region
    $region2: #{tpu_custom_call.1} parent=1 // pred_check
      _
    $region3: #{tpu_custom_call.1} parent=1 // pred_check_branch
      %11 = sbr.rel (0) target = $region5
    $region4: #{tpu_custom_call.1} parent=1 // pred_region
      _
    $region5: #{tpu_custom_call.1} parent=1 // pred_fallthru
      _
    // Predicated region
    $region6: #{tpu_custom_call.1} parent=1 // pred_check
      _
    $region7: #{tpu_custom_call.1} parent=1 // pred_check_branch
      %13 = sbr.rel (0) target = $region9
    $region8: #{tpu_custom_call.1} parent=1 // pred_region
      %s15 = ssub.s32 256, 256
      %16 = vsyncadd [#allocation4], %s15
      %s18 = sshll.u32 [#allocation3], 4
      %s19 = int_to_ptr.vmem [resolvable:$true] %s18
      %21 = dma.hbm_to_vmem [thread:$0]  %s1, 256, %s19, [#allocation4]
    $region9: #{tpu_custom_call.1} parent=1 // pred_fallthru
      _
    // Predicated region
    $region10: #{tpu_custom_call.1} parent=1 // pred_check
      _
    $region11: #{tpu_custom_call.1} parent=1 // pred_check_branch
      %23 = sbr.rel (0) target = $region13
    $region12: #{tpu_custom_call.1} parent=1 // pred_region
      %24 = dma.done [#allocation4], 256
    $region13: #{tpu_custom_call.1} parent=1 // pred_fallthru
      _
    %v25 = vld [vmem:[#allocation3] sm:$0xff]
    %v26 = vld [vmem:[#allocation3 + $0x8] sm:$0xff]
    %s27 = sld [smem:[#allocation2]]
    %s28 = smul.f32 %s27, 0.5
    %v29 = vstv %s28
    %v30 = vmul.f32 %v25, %v29
    %v31 = vmul.f32 %v26, %v29
    %v32 = vtanh.pop %v30
    %v33 = vtanh.pop %v31
    %v34 = vmul.f32 %v32, 0.5
    %v35 = vmul.f32 %v33, 0.5
    %v36 = vsub.f32 0.5, %v34
    %v37 = vsub.f32 0.5, %v35
    %v38 = vmul.f32 %v25, %v36
    %v39 = vmul.f32 %v26, %v37
    %40 = vst [vmem:[#allocation6] sm:$0xff] %v38
    %41 = vst [vmem:[#allocation6 + $0x8] sm:$0xff] %v39
    // Predicated region
    $region14: #{tpu_custom_call.1} parent=1 // pred_check
      _
    $region15: #{tpu_custom_call.1} parent=1 // pred_check_branch
      %43 = sbr.rel (0) target = $region17
    $region16: #{tpu_custom_call.1} parent=1 // pred_region
      %s45 = ssub.s32 256, 256
      %46 = vsyncadd [#allocation5], %s45
      %s48 = sshll.u32 [#allocation6], 4
      %s49 = int_to_ptr.vmem [resolvable:$true] %s48
      %51 = dma.vmem_to_hbm [thread:$0]  %s49, 256, %s2, [#allocation5]
    $region17: #{tpu_custom_call.1} parent=1 // pred_fallthru
      _
    // Predicated region
    $region18: #{tpu_custom_call.1} parent=1 // pred_check
      _
    $region19: #{tpu_custom_call.1} parent=1 // pred_check_branch
      %53 = sbr.rel (0) target = $region21
    $region20: #{tpu_custom_call.1} parent=1 // pred_region
      %54 = dma.done [#allocation5], 256
    $region21: #{tpu_custom_call.1} parent=1 // pred_fallthru
      _
    %55 = vsyncpa [#allocation4], 1
    %56 = vsyncpa [#allocation5], 1

</llo_original>
